<compile_context>
chip_gen: v7x
topology: tpu7x:2x2x1
jax: 0.10.0
libtpu: 0.0.40
codegen_flags: <defaults>
</compile_context>

<pallas_src>
import functools

import jax
import jax.numpy as jnp
from jax import lax
from jax.experimental import pallas as pl
from jax.experimental.pallas import tpu as pltpu


# ----------------------------------------------------------------------------
# Pallas kernel: fused (single matmul for 4 gates) + LSTM cell elementwise math
# ----------------------------------------------------------------------------
def convlstm_kernel(w_ref, patches_ref, state_ref, out_ref, new_state_ref, *,
                    gate_dtype):
    # w_ref        : (4C, Kp)  bf16 -- stacked gate weights [forget|input|update|output],
    #                                  sigmoid-gate rows pre-scaled by 0.5, bias folded
    #                                  in as an extra column (paired with a ones row).
    # patches_ref  : (Kp, TM)  bf16 -- im2col patches tile (one row is all ones).
    # state_ref    : (C,  TM)  f32  -- previous cell state tile.
    # out_ref      : (C,  TM)       -- LSTM output tile (out_dtype).
    # new_state_ref: (C,  TM)  f32  -- updated cell state tile.
    c = state_ref.shape[0]

    # One MXU matmul covers all four gate convolutions + bias (f32 accumulation).
    z = jnp.dot(w_ref[...], patches_ref[...],
                preferred_element_type=jnp.float32)                      # (4C, TM)

    # One EUP pass computes every gate.  Sigmoid-gate rows were pre-scaled by 0.5
    # at pack time, so sigmoid(a) = 0.5 * tanh(a / 2) + 0.5 = 0.5 * t + 0.5.
    # Gate math runs in gate_dtype (bf16 on v6e/v7x -> bf16 VPU/EUP, half the
    # vreg/VMEM footprint); the recurrent-state FMA below stays f32.
    t = jnp.tanh(z.astype(gate_dtype))
    forget_g = (0.5 * t[0 * c:1 * c] + 0.5).astype(jnp.float32)
    input_g = (0.5 * t[1 * c:2 * c] + 0.5).astype(jnp.float32)
    update_g = t[2 * c:3 * c].astype(jnp.float32)
    output_g = (0.5 * t[3 * c:4 * c] + 0.5).astype(jnp.float32)

    # Cell-state update and tanh(new_state) in f32: no bf16 drift across timesteps.
    new_state = state_ref[...] * forget_g + input_g * update_g
    new_state_ref[...] = new_state
    out_ref[...] = (jnp.tanh(new_state) * output_g).astype(out_ref.dtype)


# ----------------------------------------------------------------------------
# Glue: weight packing, bf16 im2col (channel-major), tiling heuristics, wrapper
# ----------------------------------------------------------------------------
_GATES = ("forget", "input", "update", "output")
# sigmoid gates pre-scaled by 0.5 so the kernel needs only one tanh pass
_GATE_PRESCALE = (0.5, 0.5, 1.0, 0.5)


def pack_convlstm_gates(weights, biases):
    """Stack the four gate Conv2d weights into a single bf16 MXU operand.

    Returns w_mat of shape (4*C_out, Kp) with rows ordered
    [forget | input | update | output], sigmoid rows pre-scaled by 0.5, the bias
    folded in as an extra column, and Kp = C_in*k*k + 1 rounded up to a multiple
    of 16 (bf16 sublane pack; the block covers the full K axis so no 128 rounding
    is needed).  For multi-timestep use, call this once and reuse w_mat.
    """
    C_out, C_in, k, _ = weights["forget"].shape
    K = C_in * k * k
    Kp = ((K + 1 + 15) // 16) * 16
    rows = []
    for g, s in zip(_GATES, _GATE_PRESCALE):
        w = (s * weights[g].astype(jnp.float32)).reshape(C_out, K)
        b = (s * biases[g].astype(jnp.float32))[:, None]
        pad = jnp.zeros((C_out, Kp - (K + 1)), jnp.float32)
        rows.append(jnp.concatenate([w, b, pad], axis=1))
    return jnp.concatenate(rows, axis=0).astype(jnp.bfloat16)


def _im2col_cm(x, k, pad):
    """x: (B, C, H, W) -> patches^T (C*k*k, B*H*W); rows ordered (c, kh, kw).

    Built in the input dtype (bf16 here), so the patch matrix is materialized in
    HBM only once at half width.
    """
    B, C, H, W = x.shape
    xp = jnp.pad(x, ((0, 0), (0, 0), (pad, pad), (pad, pad)))
    cols = [xp[:, :, dy:dy + H, dx:dx + W] for dy in range(k) for dx in range(k)]
    p = jnp.stack(cols, axis=2)                        # (B, C, k*k, H, W)
    p = jnp.transpose(p, (1, 2, 0, 3, 4))              # (C, k*k, B, H, W)
    return p.reshape(C * k * k, B * H * W)


def _pick_tile_m(M, *, min_steps, max_tm):
    # Biggest lane tile that still leaves >= min_steps grid steps.  Per-step
    # overhead (~0.35us) amortizes much better at 512-2048 than at 128.
    for tm in (2048, 1024, 512, 256, 128):
        if tm <= max_tm and M >= min_steps * tm:
            return tm
    return 128


def _device_defaults():
    """(gate_dtype, min_grid_steps, max_tile_m) tuned per TPU generation."""
    try:
        kind = jax.devices()[0].device_kind.lower().replace(" ", "")
    except Exception:  # pragma: no cover - non-TPU / unknown backend
        kind = ""
    is_v7x = ("v7" in kind) or ("tpu7" in kind)
    has_bf16_vpu = is_v7x or ("v6" in kind)
    # bf16 gate math only where the VPU/EUP are bf16-capable (v6e/v7x); f32 on v5e.
    gate_dtype = jnp.bfloat16 if has_bf16_vpu else jnp.float32
    # v7x: 2 TensorCores -> need >=4 grid steps so each core runs a pipelined
    # (>=2 step) share, and only 64 MiB VMEM -> cap TM at 1024.
    # v5e/v6e: 1 TC and 128 MiB VMEM -> allow TM up to 2048, >=2 steps for overlap.
    min_steps = 4 if is_v7x else 2
    max_tm = 1024 if is_v7x else 2048
    return gate_dtype, min_steps, max_tm


@functools.partial(jax.jit, static_argnames=("kernel_size", "padding",
                                             "gate_dtype", "out_dtype", "tile_m"))
def convlstm_forward_cm(x, state_cm, w_mat, *, kernel_size, padding,
                        gate_dtype, out_dtype, tile_m):
    """Channel-major ConvLSTM step.

    x:        (B, C_in, H, W)          NCHW input for this timestep
    state_cm: (C_out, B*H*W)  float32  previous cell state, channel-major
    w_mat:    (4*C_out, Kp)   bfloat16 packed gate weights (pack_convlstm_gates)
    returns (out_cm, new_state_cm): (C_out, B*H*W) each (out_cm in out_dtype).

    Multi-timestep callers should stay in this layout across steps to avoid the
    per-step NCHW<->(C, M) transposes of the convenience wrapper below.
    """
    B, C_in, H, W = x.shape
    C_out = w_mat.shape[0] // 4
    Kp = w_mat.shape[1]
    k = kernel_size
    M = B * H * W
    K = C_in * k * k
    N4 = 4 * C_out

    TM = tile_m
    Mp = pl.cdiv(M, TM) * TM

    # im2col directly in bf16 + the ones row paired with the folded bias column;
    # pad rows to Kp (zeros, contribute nothing) and lanes to the tile multiple.
    patches = _im2col_cm(x.astype(jnp.bfloat16), k, padding)               # (K, M)
    patches = jnp.concatenate([patches, jnp.ones((1, M), jnp.bfloat16)], axis=0)
    patches = jnp.pad(patches, ((0, Kp - (K + 1)), (0, Mp - M)))
    # TODO(synk): fuse im2col into the kernel (haloed row-band DMA from a
    # (C_in, B, H+2p, W+2p) HBM ref with memory_space=pl.ANY + make_async_copy) to
    # remove the k^2-inflated patch stream entirely -- the kernel is HBM-bound.

    state_p = jnp.pad(state_cm.astype(jnp.float32), ((0, 0), (0, Mp - M)))

    grid = (Mp // TM,)

    # VMEM budget: double-buffered streams + the kernel's elementwise
    # intermediates (z/t are (4C, TM); gates / new_state / tanh are (C, TM)).
    # Capped at 40 MiB so it stays well inside v7x's 64 MiB physical VMEM.
    gb = jnp.dtype(gate_dtype).itemsize
    ob = jnp.dtype(out_dtype).itemsize
    per_step = (2 * Kp * TM * 2                    # patches tile, bf16, 2 buffers
                + 2 * N4 * Kp * 2                  # resident weights, bf16, 2 buffers
                + 2 * C_out * TM * (4 + ob + 4))   # state/out/new_state tiles, 2 buffers
    interm = N4 * TM * (4 + gb) + C_out * TM * (4 * gb + 6 * 4)
    vmem_limit = int(min(40 * 2 ** 20,
                         max(32 * 2 ** 20, 2 * (per_step + interm))))

    out_cm, new_state_cm = pl.pallas_call(
        functools.partial(convlstm_kernel, gate_dtype=gate_dtype),
        out_shape=(jax.ShapeDtypeStruct((C_out, Mp), out_dtype),
                   jax.ShapeDtypeStruct((C_out, Mp), jnp.float32)),
        grid_spec=pltpu.PrefetchScalarGridSpec(
            num_scalar_prefetch=0,
            grid=grid,
            in_specs=[
                # Weights: resident (constant index map).  At large C_out consider
                # pipeline_mode=pl.Buffered(1) to drop the redundant second buffer.
                pl.BlockSpec((N4, Kp), lambda i: (0, 0)),
                pl.BlockSpec((Kp, TM), lambda i: (0, i)),      # patches tile
                pl.BlockSpec((C_out, TM), lambda i: (0, i)),   # prev state tile
            ],
            out_specs=[
                pl.BlockSpec((C_out, TM), lambda i: (0, i)),   # output tile
                pl.BlockSpec((C_out, TM), lambda i: (0, i)),   # new state tile
            ],
        ),
        input_output_aliases={2: 1},                           # state -> new_state
        compiler_params=pltpu.CompilerParams(
            dimension_semantics=("parallel",),
            vmem_limit_bytes=vmem_limit),
    )(w_mat, patches, state_p)

    return out_cm[:, :M], new_state_cm[:, :M]


def convlstm_forward(x, state, weights, biases, *, kernel_size, padding,
                     gate_dtype=None, out_dtype=jnp.float32, tile_m=None):
    """NCHW drop-in ConvLSTM forward (matches the PyTorch module).

    x:      (B, C_in, H, W)   NCHW
    state:  (B, C_out, H, W)  NCHW
    weights: dict of 4 arrays, each (C_out, C_in, k, k)   (forget/input/update/output)
    biases:  dict of 4 arrays, each (C_out,)
    gate_dtype: None -> auto (bf16 on v6e/v7x, f32 elsewhere).
    out_dtype:  dtype of the returned hidden output (bf16 halves store traffic on v5e).
    returns (output, new_state), both NCHW; new_state is float32.
    """
    B, C_in, H, W = x.shape
    C_out = weights["forget"].shape[0]
    M = B * H * W

    auto_gate, min_steps, max_tm = _device_defaults()
    if gate_dtype is None:
        gate_dtype = auto_gate
    if tile_m is None:
        tile_m = _pick_tile_m(M, min_steps=min_steps, max_tm=max_tm)

    w_mat = pack_convlstm_gates(weights, biases)
    state_cm = jnp.transpose(state.astype(jnp.float32),
                             (1, 0, 2, 3)).reshape(C_out, M)
    out_cm, new_state_cm = convlstm_forward_cm(
        x, state_cm, w_mat, kernel_size=kernel_size, padding=padding,
        gate_dtype=gate_dtype, out_dtype=out_dtype, tile_m=tile_m)

    out = jnp.transpose(out_cm.reshape(C_out, B, H, W), (1, 0, 2, 3))
    new_state = jnp.transpose(new_state_cm.reshape(C_out, B, H, W), (1, 0, 2, 3))
    return out, new_state


# ----------------------------------------------------------------------------
# Pure-JAX reference (lax.conv) for correctness checking
# ----------------------------------------------------------------------------
def convlstm_reference(x, state, weights, biases, *, padding):
    def conv(wt, b):
        dn = lax.conv_dimension_numbers(x.shape, wt.shape, ("NCHW", "OIHW", "NCHW"))
        z = lax.conv_general_dilated(x, wt, (1, 1),
                                     [(padding, padding), (padding, padding)],
                                     dimension_numbers=dn)
        return z + b[None, :, None, None]

    forget = jax.nn.sigmoid(conv(weights["forget"], biases["forget"]))
    updated = (jax.nn.sigmoid(conv(weights["input"], biases["input"]))
               * jnp.tanh(conv(weights["update"], biases["update"])))
    new_state = state * forget + updated
    out = jnp.tanh(new_state) * jax.nn.sigmoid(conv(weights["output"], biases["output"]))
    return out, new_state


# ----------------------------------------------------------------------------
if __name__ == "__main__":
    # Shapes consistent with the module: kernel_size=5 with padding=2 keeps H, W.
    B, C_in, C_out, H, W, K = 2, 4, 32, 16, 16, 5
    PAD = 2

    key = jax.random.PRNGKey(0)
    keys = jax.random.split(key, 12)

    # Deterministic PyTorch-style Conv2d init (uniform in +-1/sqrt(fan_in)).
    fan_in = C_in * K * K
    bound = 1.0 / jnp.sqrt(fan_in)

    def bf16_round(a):
        # Make inputs bf16-representable so the bf16 MXU path is lossless and the
        # f32-gate reference comparison stays tight.
        return a.astype(jnp.bfloat16).astype(jnp.float32)

    weights = {}
    biases = {}
    for idx, g in enumerate(_GATES):
        weights[g] = bf16_round(jax.random.uniform(
            keys[2 * idx], (C_out, C_in, K, K), jnp.float32, -bound, bound))
        biases[g] = bf16_round(jax.random.uniform(
            keys[2 * idx + 1], (C_out,), jnp.float32, -bound, bound))

    x = bf16_round(jax.random.normal(keys[8], (B, C_in, H, W), jnp.float32))
    state = jax.random.normal(keys[9], (B, C_out, H, W), jnp.float32)

    ref_out, ref_state = convlstm_reference(x, state, weights, biases, padding=PAD)

    def max_rel_err(a, b):
        return float(jnp.max(jnp.abs(a - b) / (1.0 + jnp.abs(b))))

    # 1) Tight correctness check with f32 gate math (valid on every generation).
    out32, st32 = convlstm_forward(x, state, weights, biases,
                                   kernel_size=K, padding=PAD,
                                   gate_dtype=jnp.float32)
    out32, st32 = jax.block_until_ready((out32, st32))
    assert out32.shape == (B, C_out, H, W) and st32.shape == (B, C_out, H, W)
    assert max_rel_err(st32, ref_state) < 2e-3
    assert max_rel_err(out32, ref_out) < 2e-3

    # 2) Production config: auto gate dtype (bf16 on v6e/v7x), auto tiling.
    out_auto, st_auto = convlstm_forward(x, state, weights, biases,
                                         kernel_size=K, padding=PAD)
    out_auto, st_auto = jax.block_until_ready((out_auto, st_auto))
    auto_gate, _, _ = _device_defaults()
    loose = 2e-3 if auto_gate == jnp.float32 else 4e-2   # bf16 gate rounding
    assert max_rel_err(st_auto, ref_state) < loose
    assert max_rel_err(out_auto, ref_out) < loose

    print("KERNEL_OK")
</pallas_src>

<mosaic_0001>
module attributes {stable_mosaic.version = 11 : i64} {
  func.func @convlstm_kernel(%arg0: i32, %arg1: memref<128x112xbf16, #tpu.memory_space<vmem>>, %arg2: memref<112x256xbf16, #tpu.memory_space<vmem>>, %arg3: memref<32x256xf32, #tpu.memory_space<vmem>>, %arg4: memref<32x256xf32, #tpu.memory_space<vmem>>, %arg5: memref<32x256xf32, #tpu.memory_space<vmem>>) attributes {dimension_semantics = [#tpu.dimension_semantics<parallel>], iteration_bounds = array<i64: 2>, scalar_prefetch = 0 : i64, scratch_operands = 0 : i64, tpu.core_type = #tpu.core_type<tc>, window_params = [{pipeline_mode = #tpu.pipeline_mode<synchronous>, transform_indices = @transform_0, window_bounds = array<i64: 128, 112>}, {transform_indices = @transform_1, window_bounds = array<i64: 112, 256>}, {transform_indices = @transform_2, window_bounds = array<i64: 32, 256>}, {transform_indices = @transform_3, window_bounds = array<i64: 32, 256>}, {transform_indices = @transform_4, window_bounds = array<i64: 32, 256>}]} {
    %c0 = arith.constant 0 : index
    %c0_0 = arith.constant 0 : index
    %0 = vector.load %arg1[%c0, %c0_0] : memref<128x112xbf16, #tpu.memory_space<vmem>>, vector<128x112xbf16>
    %c0_1 = arith.constant 0 : index
    %c0_2 = arith.constant 0 : index
    %1 = vector.load %arg2[%c0_1, %c0_2] : memref<112x256xbf16, #tpu.memory_space<vmem>>, vector<112x256xbf16>
    %cst = arith.constant dense<0.000000e+00> : vector<128x256xf32>
    %2 = tpu.matmul %0, %1, %cst {dimension_numbers = #tpu.dot_dimension_numbers<[1], [0], [0], [1], [0, 0, 1, 1], [], []>} : vector<128x112xbf16>, vector<112x256xbf16>, vector<128x256xf32> -> vector<128x256xf32>
    %3 = math.tanh %2 : vector<128x256xf32>
    %4 = vector.extract_strided_slice %3 {offsets = [0, 0], sizes = [32, 256], strides = [1, 1]} : vector<128x256xf32> to vector<32x256xf32>
    %cst_3 = arith.constant 5.000000e-01 : f32
    %5 = vector.broadcast %cst_3 : f32 to vector<32x256xf32>
    %6 = arith.mulf %5, %4 : vector<32x256xf32>
    %cst_4 = arith.constant 5.000000e-01 : f32
    %7 = vector.broadcast %cst_4 : f32 to vector<32x256xf32>
    %8 = arith.addf %6, %7 : vector<32x256xf32>
    %9 = vector.extract_strided_slice %3 {offsets = [32, 0], sizes = [32, 256], strides = [1, 1]} : vector<128x256xf32> to vector<32x256xf32>
    %cst_5 = arith.constant 5.000000e-01 : f32
    %10 = vector.broadcast %cst_5 : f32 to vector<32x256xf32>
    %11 = arith.mulf %10, %9 : vector<32x256xf32>
    %cst_6 = arith.constant 5.000000e-01 : f32
    %12 = vector.broadcast %cst_6 : f32 to vector<32x256xf32>
    %13 = arith.addf %11, %12 : vector<32x256xf32>
    %14 = vector.extract_strided_slice %3 {offsets = [64, 0], sizes = [32, 256], strides = [1, 1]} : vector<128x256xf32> to vector<32x256xf32>
    %15 = vector.extract_strided_slice %3 {offsets = [96, 0], sizes = [32, 256], strides = [1, 1]} : vector<128x256xf32> to vector<32x256xf32>
    %cst_7 = arith.constant 5.000000e-01 : f32
    %16 = vector.broadcast %cst_7 : f32 to vector<32x256xf32>
    %17 = arith.mulf %16, %15 : vector<32x256xf32>
    %cst_8 = arith.constant 5.000000e-01 : f32
    %18 = vector.broadcast %cst_8 : f32 to vector<32x256xf32>
    %19 = arith.addf %17, %18 : vector<32x256xf32>
    %c0_9 = arith.constant 0 : index
    %c0_10 = arith.constant 0 : index
    %20 = vector.load %arg3[%c0_9, %c0_10] : memref<32x256xf32, #tpu.memory_space<vmem>>, vector<32x256xf32>
    %21 = arith.mulf %20, %8 : vector<32x256xf32>
    %22 = arith.mulf %13, %14 : vector<32x256xf32>
    %23 = arith.addf %21, %22 : vector<32x256xf32>
    %c0_11 = arith.constant 0 : index
    %c0_12 = arith.constant 0 : index
    %24 = vector.load %arg5[%c0_11, %c0_12] : memref<32x256xf32, #tpu.memory_space<vmem>>, vector<32x256xf32>
    tpu.vector_store %arg5[%c0_11, %c0_12], %23 {strides = array<i32>} : memref<32x256xf32, #tpu.memory_space<vmem>>, vector<32x256xf32>,
    %25 = math.tanh %23 : vector<32x256xf32>
    %26 = arith.mulf %25, %19 : vector<32x256xf32>
    %c0_13 = arith.constant 0 : index
    %c0_14 = arith.constant 0 : index
    %27 = vector.load %arg4[%c0_13, %c0_14] : memref<32x256xf32, #tpu.memory_space<vmem>>, vector<32x256xf32>
    tpu.vector_store %arg4[%c0_13, %c0_14], %26 {strides = array<i32>} : memref<32x256xf32, #tpu.memory_space<vmem>>, vector<32x256xf32>,
    return
  }
  func.func @transform_0(%arg0: i32) -> (i32, i32) {
    %c0_i32 = arith.constant 0 : i32
    %c0_i32_0 = arith.constant 0 : i32
    %c0_i32_1 = arith.constant 0 : i32
    return %c0_i32, %c0_i32_0 : i32, i32
  }
  func.func @transform_1(%arg0: i32) -> (i32, i32) {
    %c0_i32 = arith.constant 0 : i32
    %c0_i32_0 = arith.constant 0 : i32
    return %c0_i32, %arg0 : i32, i32
  }
  func.func @transform_2(%arg0: i32) -> (i32, i32) {
    %c0_i32 = arith.constant 0 : i32
    %c0_i32_0 = arith.constant 0 : i32
    return %c0_i32, %arg0 : i32, i32
  }
  func.func @transform_3(%arg0: i32) -> (i32, i32) {
    %c0_i32 = arith.constant 0 : i32
    %c0_i32_0 = arith.constant 0 : i32
    return %c0_i32, %arg0 : i32, i32
  }
  func.func @transform_4(%arg0: i32) -> (i32, i32) {
    %c0_i32 = arith.constant 0 : i32
    %c0_i32_0 = arith.constant 0 : i32
    return %c0_i32, %arg0 : i32, i32
  }
}

</mosaic_0001>

<llo_original>
// kernel: convlstm_forward_cm.1
$region0: #{convlstm_forward_cm.1}
  #allocation0 [shape = 'u32[]', space=smem, size = 0x4, offset = 0x4, fixed_abs, tag = 'smem constant byte address 0x4 - core index']
  #allocation1 [shape = 'u32[144,128]{1,0:T(1,128)}', space=vmem, size = 0x12000, scoped, tag = 'internal scratch']
  %s0 = inlined_call_operand.vmem [shape: bf16[128,112], index: 0, kind: input, shape index: {}]
  %s1 = inlined_call_operand.vmem [shape: bf16[112,512], index: 1, kind: input, shape index: {}]
  %s2 = inlined_call_operand.hbm [shape: f32[32,512], index: 2, kind: input, shape index: {}, may-alias: {2,4}]
  %s3 = inlined_call_operand.hbm [shape: f32[32,512], index: 3, kind: output, shape index: {0}]
  %s4 = inlined_call_operand.hbm [shape: f32[32,512], index: 4, kind: output, shape index: {1}, may-alias: {2,4}]
  %5 = xla_tuple %s3, %s4
  %s6 = sld [smem:[#allocation0]]
  $region95: #{convlstm_forward_cm.1} parent=0
    _
  %s8 = ssub.s32 1, %s6
  %s9 = scalar_select 0, %s8, %s6
  $region1: #{convlstm_forward_cm.1} parent=0
    #allocation2 [shape = 'u8[114688]{0}', space=vmem, size = 0x1c000, scoped, tag = 'input window, operand 1']
    #allocation3 [shape = 'u8[65536]{0}', space=vmem, size = 0x10000, scoped, tag = 'input window, operand 2']
    #allocation4 [shape = 's32[2]{0}', space=sflag, size = 0x8, scoped, tag = 'scoped memory for convlstm_forward_cm.1']
    #allocation5 [shape = 's32[2]{0}', space=sflag, size = 0x8, scoped, tag = 'scoped memory for convlstm_forward_cm.1']
    #allocation6 [shape = 'u8[65536]{0}', space=vmem, size = 0x10000, scoped, tag = 'output window, operand 0']
    #allocation7 [shape = 'u8[65536]{0}', space=vmem, size = 0x10000, scoped, tag = 'output window, operand 1']
    #allocation8 [shape = 's32[2]{0}', space=sflag, size = 0x8, scoped, tag = 'scoped memory for convlstm_forward_cm.1']
    %10 = vsyncpa [#allocation4], 0
    %s11 = scalar_lea.sflag [#allocation4], 1
    %12 = vsyncpa %s11, 0
    %13 = vsyncpa [#allocation5], 0
    %s14 = scalar_lea.sflag [#allocation5], 1
    %15 = vsyncpa %s14, 0
    %16 = vsyncpa [#allocation8], 0
    %s17 = scalar_lea.sflag [#allocation8], 1
    %18 = vsyncpa %s17, 0
    loop: start=0, step=1, limit=4
    $region2: #{convlstm_forward_cm.1} parent=1 // loop_pre_header
      _
    $region3: #{convlstm_forward_cm.1} parent=1 // loop_header
      %s20 = sphi 0, %s24
      %p21 = scmp.ge.s32.totalorder %s20, 4
      %s28 = sphi 0, %s28
      %s30 = sphi 0, %s28
      %s31 = sphi 0, %s30
      %s45 = sphi 0, %s31
      %s51 = sphi 0, %s53
      %s54 = sphi 0, %s51
      %s55 = sphi 0, %s54
      %s71 = sphi 0, %s55
      %s77 = sphi 0, %s79
      %s80 = sphi 0, %s77
      %s81 = sphi 0, %s80
      %s97 = sphi 0, %s81
      %s103 = sphi 0, %s105
      %s106 = sphi 0, %s103
      %s107 = sphi 0, %s106
      %s123 = sphi 0, %s107
      %s129 = sphi 0, %s131
      %s132 = sphi 0, %s129
      %s133 = sphi 0, %s132
      %s149 = sphi 0, %s133
    $region4: #{convlstm_forward_cm.1} parent=1 // loop_header_branch
      %23 = sbr.rel (%p21) target = $region8
    $region5: #{convlstm_forward_cm.1} parent=1 // loop_body
      %s25 = ssub.s32 %s20, 1
      %s26 = ssub.s32 %s20, 2
      %s27 = sadd.s32 %s20, 1
      %s29 = sadd.s32 %s28, 1
      %p32 = scmp.eq.s32.totalorder %s20, 1
      %p33 = scmp.ne.s32.totalorder %s28, %s30
      %p34 = scmp.eq.s32.totalorder %s20, 0
      %p35 = por %p33, %p34
      %p36 = scmp.ne.s32.totalorder %s28, %s30
      %p37 = scmp.eq.s32.totalorder %s25, 1
      %p38 = por %p36, %p37
      %p39 = scmp.ne.s32.totalorder %s30, %s31
      %p40 = scmp.eq.s32.totalorder %s25, 0
      %p41 = por %p39, %p40
      %p42 = scmp.ne.s32.totalorder %s30, %s31
      %p43 = scmp.eq.s32.totalorder %s26, 1
      %p44 = por %p42, %p43
      %p46 = scmp.ne.s32.totalorder %s31, %s45
      %p47 = scmp.eq.s32.totalorder %s26, 0
      %p48 = por %p46, %p47
      %s49 = ssub.s32 %s20, %s27
      %p50 = scmp.eq.s32.totalorder %s49, 0
      %s52 = sadd.s32 %s51, 1
      %s53 = scalar_select %p50, %s51, %s52
      %p56 = pneg %p50
      %p57 = scmp.eq.s32.totalorder %s20, 1
      %p58 = por %p56, %p57
      %p59 = scmp.ne.s32.totalorder %s51, %s54
      %p60 = scmp.eq.s32.totalorder %s20, 0
      %p61 = por %p59, %p60
      %p62 = scmp.ne.s32.totalorder %s51, %s54
      %p63 = scmp.eq.s32.totalorder %s25, 1
      %p64 = por %p62, %p63
      %p65 = scmp.ne.s32.totalorder %s54, %s55
      %p66 = scmp.eq.s32.totalorder %s25, 0
      %p67 = por %p65, %p66
      %p68 = scmp.ne.s32.totalorder %s54, %s55
      %p69 = scmp.eq.s32.totalorder %s26, 1
      %p70 = por %p68, %p69
      %p72 = scmp.ne.s32.totalorder %s55, %s71
      %p73 = scmp.eq.s32.totalorder %s26, 0
      %p74 = por %p72, %p73
      %s75 = ssub.s32 %s20, %s27
      %p76 = scmp.eq.s32.totalorder %s75, 0
      %s78 = sadd.s32 %s77, 1
      %s79 = scalar_select %p76, %s77, %s78
      %p82 = pneg %p76
      %p83 = scmp.eq.s32.totalorder %s20, 1
      %p84 = por %p82, %p83
      %p85 = scmp.ne.s32.totalorder %s77, %s80
      %p86 = scmp.eq.s32.totalorder %s20, 0
      %p87 = por %p85, %p86
      %p88 = scmp.ne.s32.totalorder %s77, %s80
      %p89 = scmp.eq.s32.totalorder %s25, 1
      %p90 = por %p88, %p89
      %p91 = scmp.ne.s32.totalorder %s80, %s81
      %p92 = scmp.eq.s32.totalorder %s25, 0
      %p93 = por %p91, %p92
      %p94 = scmp.ne.s32.totalorder %s80, %s81
      %p95 = scmp.eq.s32.totalorder %s26, 1
      %p96 = por %p94, %p95
      %p98 = scmp.ne.s32.totalorder %s81, %s97
      %p99 = scmp.eq.s32.totalorder %s26, 0
      %p100 = por %p98, %p99
      %s101 = ssub.s32 %s20, %s27
      %p102 = scmp.eq.s32.totalorder %s101, 0
      %s104 = sadd.s32 %s103, 1
      %s105 = scalar_select %p102, %s103, %s104
      %p108 = pneg %p102
      %p109 = scmp.eq.s32.totalorder %s20, 1
      %p110 = por %p108, %p109
      %p111 = scmp.ne.s32.totalorder %s103, %s106
      %p112 = scmp.eq.s32.totalorder %s20, 0
      %p113 = por %p111, %p112
      %p114 = scmp.ne.s32.totalorder %s103, %s106
      %p115 = scmp.eq.s32.totalorder %s25, 1
      %p116 = por %p114, %p115
      %p117 = scmp.ne.s32.totalorder %s106, %s107
      %p118 = scmp.eq.s32.totalorder %s25, 0
      %p119 = por %p117, %p118
      %p120 = scmp.ne.s32.totalorder %s106, %s107
      %p121 = scmp.eq.s32.totalorder %s26, 1
      %p122 = por %p120, %p121
      %p124 = scmp.ne.s32.totalorder %s107, %s123
      %p125 = scmp.eq.s32.totalorder %s26, 0
      %p126 = por %p124, %p125
      %s127 = ssub.s32 %s20, %s27
      %p128 = scmp.eq.s32.totalorder %s127, 0
      %s130 = sadd.s32 %s129, 1
      %s131 = scalar_select %p128, %s129, %s130
      %p134 = pneg %p128
      %p135 = scmp.eq.s32.totalorder %s20, 1
      %p136 = por %p134, %p135
      %p137 = scmp.ne.s32.totalorder %s129, %s132
      %p138 = scmp.eq.s32.totalorder %s20, 0
      %p139 = por %p137, %p138
      %p140 = scmp.ne.s32.totalorder %s129, %s132
      %p141 = scmp.eq.s32.totalorder %s25, 1
      %p142 = por %p140, %p141
      %p143 = scmp.ne.s32.totalorder %s132, %s133
      %p144 = scmp.eq.s32.totalorder %s25, 0
      %p145 = por %p143, %p144
      %p146 = scmp.ne.s32.totalorder %s132, %s133
      %p147 = scmp.eq.s32.totalorder %s26, 1
      %p148 = por %p146, %p147
      %p150 = scmp.ne.s32.totalorder %s133, %s149
      %p151 = scmp.eq.s32.totalorder %s26, 0
      %p152 = por %p150, %p151
      %p153 = scmp.le.s32.totalorder 1, %s20
      %p154 = scmp.lt.s32.totalorder %s20, 3
      %p155 = pnand %p153, %p154
      %p156 = pneg %p155
      // Predicated region
      $region9: #{convlstm_forward_cm.1} parent=5 // pred_check
        _
      $region10: #{convlstm_forward_cm.1} parent=5 // pred_check_branch
        %158 = sbr.rel (%p155) target = $region12
      $region11: #{convlstm_forward_cm.1} parent=5 // pred_region
        %s159 = ssub.s32 %s20, 1
        // Predicated region
        $region13: #{convlstm_forward_cm.1} parent=11 // pred_check
          %p160 = pneg %p41
        $region14: #{convlstm_forward_cm.1} parent=11 // pred_check_branch
          %162 = sbr.rel (%p160) target = $region16
        $region15: #{convlstm_forward_cm.1} parent=11 // pred_region
          _
        $region16: #{convlstm_forward_cm.1} parent=11 // pred_fallthru
          _
      $region12: #{convlstm_forward_cm.1} parent=5 // pred_fallthru
        _
      %p163 = scmp.lt.s32.totalorder %s20, 2
      // Predicated region
      $region17: #{convlstm_forward_cm.1} parent=5 // pred_check
        %p164 = pneg %p163
      $region18: #{convlstm_forward_cm.1} parent=5 // pred_check_branch
        %166 = sbr.rel (%p164) target = $region20
      $region19: #{convlstm_forward_cm.1} parent=5 // pred_region
        // Predicated region
        $region21: #{convlstm_forward_cm.1} parent=19 // pred_check
          %p167 = pneg %p61
        $region22: #{convlstm_forward_cm.1} parent=19 // pred_check_branch
          %169 = sbr.rel (%p167) target = $region24
        $region23: #{convlstm_forward_cm.1} parent=19 // pred_region
          %s170 = sand.u32 %s51, 1
          %s171 = sand.u32 %s51, 1
          %s172 = smul.addr %s171, 112
          %s173 = scalar_lea.vmem [#allocation2], %s172
          %s174 = smul.u32 2, %s20
          %s175 = smul.addr %s174, 4
          %s176 = scalar_lea.vmem %s1, %s175
          // Predicated region
          $region25: #{convlstm_forward_cm.1} parent=23 // pred_check
            _
          $region26: #{convlstm_forward_cm.1} parent=23 // pred_check_branch
            %178 = sbr.rel (0) target = $region28
          $region27: #{convlstm_forward_cm.1} parent=23 // pred_region
            // Predicated region
            $region29: #{convlstm_forward_cm.1} parent=27 // pred_check
              _
            $region30: #{convlstm_forward_cm.1} parent=27 // pred_check_branch
              %180 = sbr.rel (0) target = $region32
            $region31: #{convlstm_forward_cm.1} parent=27 // pred_region
              // Predicated region
              $region44: #{convlstm_forward_cm.1} parent=31 // pred_check
                _
              $region45: #{convlstm_forward_cm.1} parent=31 // pred_check_branch
                %221 = sbr.rel (0) target = $region47
              $region46: #{convlstm_forward_cm.1} parent=31 // pred_region
                loop: start=0, step=1, limit=1
                $region48: #{convlstm_forward_cm.1} parent=46 // loop_pre_header
                  _
                $region49: #{convlstm_forward_cm.1} parent=46 // loop_header
                  %s223 = sphi 0, %s227
                  %p224 = scmp.ge.s32.totalorder %s223, 1
                  %s228 = sphi %s176, %s176
                  %s229 = sphi %s173, %s173
                $region50: #{convlstm_forward_cm.1} parent=46 // loop_header_branch
                  %226 = sbr.rel (%p224) target = $region54
                $region51: #{convlstm_forward_cm.1} parent=46 // loop_body
                  %v230 = vld [vmem:[%s228] sm:$0xff]
                  %231 = vst [vmem:[%s229] sm:$0xff] %v230
                  %v232 = vld [vmem:[%s228 + $0x10] sm:$0xff]
                  %233 = vst [vmem:[%s229 + $0x8] sm:$0xff] %v232
                  %v234 = vld [vmem:[%s228 + $0x20] sm:$0xff]
                  %235 = vst [vmem:[%s229 + $0x10] sm:$0xff] %v234
                  %v236 = vld [vmem:[%s228 + $0x30] sm:$0xff]
                  %237 = vst [vmem:[%s229 + $0x18] sm:$0xff] %v236
                  %v238 = vld [vmem:[%s228 + $0x40] sm:$0xff]
                  %239 = vst [vmem:[%s229 + $0x20] sm:$0xff] %v238
                  %v240 = vld [vmem:[%s228 + $0x50] sm:$0xff]
                  %241 = vst [vmem:[%s229 + $0x28] sm:$0xff] %v240
                  %v242 = vld [vmem:[%s228 + $0x60] sm:$0xff]
                  %243 = vst [vmem:[%s229 + $0x30] sm:$0xff] %v242
                  %v244 = vld [vmem:[%s228 + $0x70] sm:$0xff]
                  %245 = vst [vmem:[%s229 + $0x38] sm:$0xff] %v244
                  %v246 = vld [vmem:[%s228 + $0x80] sm:$0xff]
                  %247 = vst [vmem:[%s229 + $0x40] sm:$0xff] %v246
                  %v248 = vld [vmem:[%s228 + $0x90] sm:$0xff]
                  %249 = vst [vmem:[%s229 + $0x48] sm:$0xff] %v248
                  %v250 = vld [vmem:[%s228 + $0xa0] sm:$0xff]
                  %251 = vst [vmem:[%s229 + $0x50] sm:$0xff] %v250
                  %v252 = vld [vmem:[%s228 + $0xb0] sm:$0xff]
                  %253 = vst [vmem:[%s229 + $0x58] sm:$0xff] %v252
                  %v254 = vld [vmem:[%s228 + $0xc0] sm:$0xff]
                  %255 = vst [vmem:[%s229 + $0x60] sm:$0xff] %v254
                  %v256 = vld [vmem:[%s228 + $0xd0] sm:$0xff]
                  %257 = vst [vmem:[%s229 + $0x68] sm:$0xff] %v256
                $region52: #{convlstm_forward_cm.1} parent=46 // loop_footer
                  %s227 = sadd.s32 1, %s223
                $region53: #{convlstm_forward_cm.1} parent=46 // loop_footer_branch
                  %222 = sbr.rel target = $region49
                $region54: #{convlstm_forward_cm.1} parent=46 // loop_exit
                  _
              $region47: #{convlstm_forward_cm.1} parent=31 // pred_fallthru
                _
              // Predicated region
              $region55: #{convlstm_forward_cm.1} parent=31 // pred_check
                _
              $region56: #{convlstm_forward_cm.1} parent=31 // pred_check_branch
                %259 = sbr.rel target = $region58
              $region57: #{convlstm_forward_cm.1} parent=31 // pred_region
                _
              $region58: #{convlstm_forward_cm.1} parent=31 // pred_fallthru
                _
            $region32: #{convlstm_forward_cm.1} parent=27 // pred_fallthru
              _
            // Predicated region
            $region33: #{convlstm_forward_cm.1} parent=27 // pred_check
              _
            $region34: #{convlstm_forward_cm.1} parent=27 // pred_check_branch
              %182 = sbr.rel target = $region36
            $region35: #{convlstm_forward_cm.1} parent=27 // pred_region
              loop: start=0, step=1, limit=1
              $region37: #{convlstm_forward_cm.1} parent=35 // loop_pre_header
                _
              $region38: #{convlstm_forward_cm.1} parent=35 // loop_header
                %s185 = sphi 0, %s189
                %p186 = scmp.ge.s32.totalorder %s185, 1
                %s190 = sphi %s176, %s176
                %s191 = sphi %s173, %s173
              $region39: #{convlstm_forward_cm.1} parent=35 // loop_header_branch
                %188 = sbr.rel (%p186) target = $region43
              $region40: #{convlstm_forward_cm.1} parent=35 // loop_body
                %v192 = vld [vmem:[%s190] sm:$0xff]
                %193 = vst [vmem:[%s191] sm:$0xff] %v192
                %v194 = vld [vmem:[%s190 + $0x10] sm:$0xff]
                %195 = vst [vmem:[%s191 + $0x8] sm:$0xff] %v194
                %v196 = vld [vmem:[%s190 + $0x20] sm:$0xff]
                %197 = vst [vmem:[%s191 + $0x10] sm:$0xff] %v196
                %v198 = vld [vmem:[%s190 + $0x30] sm:$0xff]
                %199 = vst [vmem:[%s191 + $0x18] sm:$0xff] %v198
                %v200 = vld [vmem:[%s190 + $0x40] sm:$0xff]
                %201 = vst [vmem:[%s191 + $0x20] sm:$0xff] %v200
                %v202 = vld [vmem:[%s190 + $0x50] sm:$0xff]
                %203 = vst [vmem:[%s191 + $0x28] sm:$0xff] %v202
                %v204 = vld [vmem:[%s190 + $0x60] sm:$0xff]
                %205 = vst [vmem:[%s191 + $0x30] sm:$0xff] %v204
                %v206 = vld [vmem:[%s190 + $0x70] sm:$0xff]
                %207 = vst [vmem:[%s191 + $0x38] sm:$0xff] %v206
                %v208 = vld [vmem:[%s190 + $0x80] sm:$0xff]
                %209 = vst [vmem:[%s191 + $0x40] sm:$0xff] %v208
                %v210 = vld [vmem:[%s190 + $0x90] sm:$0xff]
                %211 = vst [vmem:[%s191 + $0x48] sm:$0xff] %v210
                %v212 = vld [vmem:[%s190 + $0xa0] sm:$0xff]
                %213 = vst [vmem:[%s191 + $0x50] sm:$0xff] %v212
                %v214 = vld [vmem:[%s190 + $0xb0] sm:$0xff]
                %215 = vst [vmem:[%s191 + $0x58] sm:$0xff] %v214
                %v216 = vld [vmem:[%s190 + $0xc0] sm:$0xff]
                %217 = vst [vmem:[%s191 + $0x60] sm:$0xff] %v216
                %v218 = vld [vmem:[%s190 + $0xd0] sm:$0xff]
                %219 = vst [vmem:[%s191 + $0x68] sm:$0xff] %v218
              $region41: #{convlstm_forward_cm.1} parent=35 // loop_footer
                %s189 = sadd.s32 1, %s185
              $region42: #{convlstm_forward_cm.1} parent=35 // loop_footer_branch
                %184 = sbr.rel target = $region38
              $region43: #{convlstm_forward_cm.1} parent=35 // loop_exit
                _
            $region36: #{convlstm_forward_cm.1} parent=27 // pred_fallthru
              _
          $region28: #{convlstm_forward_cm.1} parent=23 // pred_fallthru
            _
          %260 = vnop
        $region24: #{convlstm_forward_cm.1} parent=19 // pred_fallthru
          _
        // Predicated region
        $region59: #{convlstm_forward_cm.1} parent=19 // pred_check
          %p261 = pneg %p87
        $region60: #{convlstm_forward_cm.1} parent=19 // pred_check_branch
          %263 = sbr.rel (%p261) target = $region62
        $region61: #{convlstm_forward_cm.1} parent=19 // pred_region
          %s264 = sand.u32 %s77, 1
          %s265 = scalar_lea.sflag [#allocation4], %s264
          %s266 = sand.u32 %s77, 1
          %s267 = smul.addr %s266, 64
          %s268 = scalar_lea.vmem [#allocation3], %s267
          %s269 = smul.u32 2, %s20
          %s271 = ssub.s32 1024, 1024
          %272 = vsyncadd %s265, %s271
          %s273 = smul.addr %s269, 128
          %s274 = scalar_lea.hbm %s2, %s273
          %s275 = sshll.u32 %s268, 4
          %s276 = int_to_ptr.vmem [resolvable:$true] %s275
          %281 = dma.hbm_to_vmem [thread:$0]  %s274, 1024, %s276, %s265, 512, 256, 16
        $region62: #{convlstm_forward_cm.1} parent=19 // pred_fallthru
          _
      $region20: #{convlstm_forward_cm.1} parent=5 // pred_fallthru
        _
      %p282 = scmp.le.s32.totalorder 1, %s20
      %p283 = scmp.lt.s32.totalorder %s20, 3
      %p284 = pnand %p282, %p283
      %p285 = pneg %p284
      // Predicated region
      $region63: #{convlstm_forward_cm.1} parent=5 // pred_check
        _
      $region64: #{convlstm_forward_cm.1} parent=5 // pred_check_branch
        %287 = sbr.rel (%p284) target = $region66
      $region65: #{convlstm_forward_cm.1} parent=5 // pred_region
        %s288 = ssub.s32 %s20, 1
        %s289 = sand.u32 %s54, 1
        %s290 = sand.u32 %s54, 1
        %s291 = smul.addr %s290, 112
        %s292 = scalar_lea.vmem [#allocation2], %s291
        // Predicated region
        $region67: #{convlstm_forward_cm.1} parent=65 // pred_check
          %p293 = pneg %p67
        $region68: #{convlstm_forward_cm.1} parent=65 // pred_check_branch
          %295 = sbr.rel (%p293) target = $region70
        $region69: #{convlstm_forward_cm.1} parent=65 // pred_region
          _
        $region70: #{convlstm_forward_cm.1} parent=65 // pred_fallthru
          _
        %s296 = sand.u32 %s80, 1
        %s297 = scalar_lea.sflag [#allocation4], %s296
        %s298 = sand.u32 %s80, 1
        %s299 = smul.addr %s298, 64
        %s300 = scalar_lea.vmem [#allocation3], %s299
        // Predicated region
        $region71: #{convlstm_forward_cm.1} parent=65 // pred_check
          %p301 = pneg %p93
        $region72: #{convlstm_forward_cm.1} parent=65 // pred_check_branch
          %303 = sbr.rel (%p301) target = $region74
        $region73: #{convlstm_forward_cm.1} parent=65 // pred_region
          %304 = dma.done %s297, 1024
        $region74: #{convlstm_forward_cm.1} parent=65 // pred_fallthru
          _
        %p305 = pneg %p41
        %p306 = pneg %p38
        %s307 = sand.u32 %s54, 1
        %s308 = sand.u32 %s54, 1
        %s309 = smul.addr %s308, 112
        %s310 = scalar_lea.vmem [#allocation2], %s309
        %p311 = pneg %p67
        %p312 = pneg %p64
        %s313 = sand.u32 %s80, 1
        %s314 = scalar_lea.sflag [#allocation4], %s313
        %s315 = sand.u32 %s80, 1
        %s316 = smul.addr %s315, 64
        %s317 = scalar_lea.vmem [#allocation3], %s316
        %p318 = pneg %p93
        %p319 = pneg %p90
        %p320 = pneg %p119
        %p321 = pneg %p116
        %s322 = sand.u32 %s106, 1
        %s323 = scalar_lea.sflag [#allocation5], %s322
        %s324 = sand.u32 %s106, 1
        %s325 = smul.addr %s324, 64
        %s326 = scalar_lea.vmem [#allocation6], %s325
        %p327 = pneg %p145
        %p328 = pneg %p142
        %s329 = sand.u32 %s132, 1
        %s330 = scalar_lea.sflag [#allocation8], %s329
        %s331 = sand.u32 %s132, 1
        %s332 = smul.addr %s331, 64
        %s333 = scalar_lea.vmem [#allocation7], %s332
        %s334 = smul.u32 2, %s25
        %s335 = smul.u32 2, %s25
        %s336 = smul.u32 2, %s25
        %s337 = smul.u32 2, %s25
        %v339 = vld [vmem:[%s0] sm:$0xf]
        %v340 = vld [vmem:[%s0 + $0x4] sm:$0xf]
        %v341 = vld [vmem:[%s0 + $0x8] sm:$0xf]
        %v342 = vld [vmem:[%s0 + $0xc] sm:$0xf]
        %v343 = vld [vmem:[%s0 + $0x10] sm:$0xf]
        %v344 = vld [vmem:[%s0 + $0x14] sm:$0xf]
        %v345 = vld [vmem:[%s0 + $0x18] sm:$0xf]
        %v346 = vld [vmem:[%s0 + $0x1c] sm:$0xf]
        %v347 = vld [vmem:[%s0 + $0x20] sm:$0xf]
        %v348 = vld [vmem:[%s0 + $0x24] sm:$0xf]
        %v349 = vld [vmem:[%s0 + $0x28] sm:$0xf]
        %v350 = vld [vmem:[%s0 + $0x2c] sm:$0xf]
        %v351 = vld [vmem:[%s0 + $0x30] sm:$0xf]
        %v352 = vld [vmem:[%s0 + $0x34] sm:$0xf]
        %v353 = vld [vmem:[%s0 + $0x38] sm:$0xf]
        %v354 = vld [vmem:[%s0 + $0x3c] sm:$0xf]
        %v355 = vld [vmem:[%s292] sm:$0xff]
        %v356 = vld [vmem:[%s292 + $0x8] sm:$0xff]
        %v357 = vld [vmem:[%s292 + $0x10] sm:$0xff]
        %v358 = vld [vmem:[%s292 + $0x18] sm:$0xff]
        %v359 = vld [vmem:[%s292 + $0x20] sm:$0xff]
        %v360 = vld [vmem:[%s292 + $0x28] sm:$0xff]
        %v361 = vld [vmem:[%s292 + $0x30] sm:$0xff]
        %v362 = vld [vmem:[%s292 + $0x38] sm:$0xff]
        %v363 = vld [vmem:[%s292 + $0x40] sm:$0xff]
        %v364 = vld [vmem:[%s292 + $0x48] sm:$0xff]
        %v365 = vld [vmem:[%s292 + $0x50] sm:$0xff]
        %v366 = vld [vmem:[%s292 + $0x58] sm:$0xff]
        %v367 = vld [vmem:[%s292 + $0x60] sm:$0xff]
        %v368 = vld [vmem:[%s292 + $0x68] sm:$0xff]
        %v385 = vunpack.c.l.b16 %v339
        %v386 = vunpack.c.l.b16 %v340
        %v387 = vunpack.c.l.b16 %v341
        %v388 = vunpack.c.l.b16 %v342
        %v389 = vunpack.c.l.b16 %v343
        %v390 = vunpack.c.l.b16 %v344
        %v391 = vunpack.c.l.b16 %v345
        %v392 = vunpack.c.l.b16 %v346
        %v393 = vunpack.c.l.b16 %v347
        %v394 = vunpack.c.l.b16 %v348
        %v395 = vunpack.c.l.b16 %v349
        %v396 = vunpack.c.l.b16 %v350
        %v397 = vunpack.c.l.b16 %v351
        %v398 = vunpack.c.l.b16 %v352
        %v399 = vunpack.c.l.b16 %v353
        %v400 = vunpack.c.l.b16 %v354
        %v401 = vpack.c.b16 %v386, %v385
        %v402 = vpack.c.b16 %v388, %v387
        %v403 = vpack.c.b16 %v390, %v389
        %v404 = vpack.c.b16 %v392, %v391
        %v405 = vpack.c.b16 %v394, %v393
        %v406 = vpack.c.b16 %v396, %v395
        %v407 = vpack.c.b16 %v398, %v397
        %v408 = vpack.c.b16 %v400, %v399
        %v423 = vunpack.c.l.b16 %v355
        %v424 = vunpack.c.h.b16 %v355
        %v425 = vunpack.c.l.b16 %v356
        %v426 = vunpack.c.h.b16 %v356
        %v427 = vunpack.c.l.b16 %v357
        %v428 = vunpack.c.h.b16 %v357
        %v429 = vunpack.c.l.b16 %v358
        %v430 = vunpack.c.h.b16 %v358
        %v431 = vunpack.c.l.b16 %v359
        %v432 = vunpack.c.h.b16 %v359
        %v433 = vunpack.c.l.b16 %v360
        %v434 = vunpack.c.h.b16 %v360
        %v435 = vunpack.c.l.b16 %v361
        %v436 = vunpack.c.h.b16 %v361
        %v437 = vunpack.c.l.b16 %v362
        %v438 = vunpack.c.h.b16 %v362
        %v439 = vunpack.c.l.b16 %v363
        %v440 = vunpack.c.h.b16 %v363
        %v441 = vunpack.c.l.b16 %v364
        %v442 = vunpack.c.h.b16 %v364
        %v443 = vunpack.c.l.b16 %v365
        %v444 = vunpack.c.h.b16 %v365
        %v445 = vunpack.c.l.b16 %v366
        %v446 = vunpack.c.h.b16 %v366
        %v447 = vunpack.c.l.b16 %v367
        %v448 = vunpack.c.h.b16 %v367
        %v449 = vunpack.c.l.b16 %v368
        %v450 = vunpack.c.h.b16 %v368
        %v451 = vpack.c.b16 %v425, %v423
        %v452 = vpack.c.b16 %v426, %v424
        %v453 = vpack.c.b16 %v429, %v427
        %v454 = vpack.c.b16 %v430, %v428
        %v455 = vpack.c.b16 %v433, %v431
        %v456 = vpack.c.b16 %v434, %v432
        %v457 = vpack.c.b16 %v437, %v435
        %v458 = vpack.c.b16 %v438, %v436
        %v459 = vpack.c.b16 %v441, %v439
        %v460 = vpack.c.b16 %v442, %v440
        %v461 = vpack.c.b16 %v445, %v443
        %v462 = vpack.c.b16 %v446, %v444
        %v463 = vpack.c.b16 %v449, %v447
        %v464 = vpack.c.b16 %v450, %v448
        %vm479 = vcmask 916480
        %v481 = vsel %vm479, %v401, 0
        %v484 = vsel %vm479, %v402, 0
        %v487 = vsel %vm479, %v403, 0
        %v490 = vsel %vm479, %v404, 0
        %v493 = vsel %vm479, %v405, 0
        %v496 = vsel %vm479, %v406, 0
        %v499 = vsel %vm479, %v407, 0
        %v502 = vsel %vm479, %v408, 0
        %504 = vmatprep.subr.bf16.mxu0 %v452
        %505 = vmatpush1.bf16.msra.mxu0 %v451
        %506 = vmatprep.subr.bf16.mxu0 %v454
        %507 = vmatpush1.bf16.msra.mxu0 %v453
        %508 = vmatprep.subr.bf16.mxu0 %v456
        %509 = vmatpush1.bf16.msra.mxu0 %v455
        %510 = vmatprep.subr.bf16.mxu0 %v458
        %511 = vmatpush1.bf16.msra.mxu0 %v457
        %512 = vmatprep.subr.bf16.mxu0 %v460
        %513 = vmatpush1.bf16.msra.mxu0 %v459
        %514 = vmatprep.subr.bf16.mxu0 %v462
        %515 = vmatpush1.bf16.msra.mxu0 %v461
        %516 = vmatprep.subr.bf16.mxu0 %v464
        %517 = vmatpush1.bf16.msra.mxu0 %v463
        %518 = vmatprep.subr.bf16.mxu0 0
        %519 = vmatpush1.bf16.msra.mxu0 0
        %520 = vmatprep.subr.bf16.mxu0 0
        %521 = vmatpush1.bf16.msra.mxu0 0
        %522 = vmatprep.subr.bf16.mxu0 0
        %523 = vmatpush1.bf16.msra.mxu0 0
        %524 = vmatprep.subr.bf16.mxu0 0
        %525 = vmatpush1.bf16.msra.mxu0 0
        %526 = vmatprep.subr.bf16.mxu0 0
        %527 = vmatpush1.bf16.msra.mxu0 0
        %528 = vmatprep.subr.bf16.mxu0 0
        %529 = vmatpush1.bf16.msra.mxu0 0
        %530 = vmatprep.subr.bf16.mxu0 0
        %531 = vmatpush1.bf16.msra.mxu0 0
        %532 = vmatprep.subr.bf16.mxu0 0
        %533 = vmatpush1.bf16.msra.mxu0 0
        %534 = vmatprep.subr.bf16.mxu0 0
        %535 = vmatpush1.bf16.msra.mxu0 0
        %536 = vmatprep.mubr.bf16.mxu0 0
        %537 = vmatmul.mubr.bf16.gmra.mrb[0].mxu0 %v481
        %v538 = vpop.f32.mrb[0].mxu0
        %v539 = vadd.f32 0.0, %v538
        %v540 = vpop.f32.mrb[0].mxu0
        %v541 = vadd.f32 0.0, %v540
        %v542 = vpop.f32.mrb[0].mxu0
        %v543 = vadd.f32 0.0, %v542
        %v544 = vpop.f32.mrb[0].mxu0
        %v545 = vadd.f32 0.0, %v544
        %546 = vmatprep.mubr.bf16.mxu0 0
        %547 = vmatmul.mubr.bf16.gmra.mrb[0].mxu0 %v484
        %v548 = vpop.f32.mrb[0].mxu0
        %v549 = vadd.f32 0.0, %v548
        %v550 = vpop.f32.mrb[0].mxu0
        %v551 = vadd.f32 0.0, %v550
        %v552 = vpop.f32.mrb[0].mxu0
        %v553 = vadd.f32 0.0, %v552
        %v554 = vpop.f32.mrb[0].mxu0
        %v555 = vadd.f32 0.0, %v554
        %556 = vmatprep.mubr.bf16.mxu0 0
        %557 = vmatmul.mubr.bf16.gmra.mrb[0].mxu0 %v487
        %v558 = vpop.f32.mrb[0].mxu0
        %v559 = vadd.f32 0.0, %v558
        %v560 = vpop.f32.mrb[0].mxu0
        %v561 = vadd.f32 0.0, %v560
        %v562 = vpop.f32.mrb[0].mxu0
        %v563 = vadd.f32 0.0, %v562
        %v564 = vpop.f32.mrb[0].mxu0
        %v565 = vadd.f32 0.0, %v564
        %566 = vmatprep.mubr.bf16.mxu0 0
        %567 = vmatmul.mubr.bf16.gmra.mrb[0].mxu0 %v490
        %v568 = vpop.f32.mrb[0].mxu0
        %v569 = vadd.f32 0.0, %v568
        %v570 = vpop.f32.mrb[0].mxu0
        %v571 = vadd.f32 0.0, %v570
        %v572 = vpop.f32.mrb[0].mxu0
        %v573 = vadd.f32 0.0, %v572
        %v574 = vpop.f32.mrb[0].mxu0
        %v575 = vadd.f32 0.0, %v574
        %576 = vmatprep.mubr.bf16.mxu0 0
        %577 = vmatmul.mubr.bf16.gmra.mrb[0].mxu0 %v493
        %v578 = vpop.f32.mrb[0].mxu0
        %v579 = vadd.f32 0.0, %v578
        %v580 = vpop.f32.mrb[0].mxu0
        %v581 = vadd.f32 0.0, %v580
        %v582 = vpop.f32.mrb[0].mxu0
        %v583 = vadd.f32 0.0, %v582
        %v584 = vpop.f32.mrb[0].mxu0
        %v585 = vadd.f32 0.0, %v584
        %586 = vmatprep.mubr.bf16.mxu0 0
        %587 = vmatmul.mubr.bf16.gmra.mrb[0].mxu0 %v496
        %v588 = vpop.f32.mrb[0].mxu0
        %v589 = vadd.f32 0.0, %v588
        %v590 = vpop.f32.mrb[0].mxu0
        %v591 = vadd.f32 0.0, %v590
        %v592 = vpop.f32.mrb[0].mxu0
        %v593 = vadd.f32 0.0, %v592
        %v594 = vpop.f32.mrb[0].mxu0
        %v595 = vadd.f32 0.0, %v594
        %596 = vmatprep.mubr.bf16.mxu0 0
        %597 = vmatmul.mubr.bf16.gmra.mrb[0].mxu0 %v499
        %v598 = vpop.f32.mrb[0].mxu0
        %v599 = vadd.f32 0.0, %v598
        %v600 = vpop.f32.mrb[0].mxu0
        %v601 = vadd.f32 0.0, %v600
        %v602 = vpop.f32.mrb[0].mxu0
        %v603 = vadd.f32 0.0, %v602
        %v604 = vpop.f32.mrb[0].mxu0
        %v605 = vadd.f32 0.0, %v604
        %606 = vmatprep.mubr.bf16.mxu0 0
        %607 = vmatmul.mubr.bf16.gmra.mrb[0].mxu0 %v502
        %v608 = vpop.f32.mrb[0].mxu0
        %v609 = vadd.f32 0.0, %v608
        %v610 = vpop.f32.mrb[0].mxu0
        %v611 = vadd.f32 0.0, %v610
        %v612 = vpop.f32.mrb[0].mxu0
        %v613 = vadd.f32 0.0, %v612
        %v614 = vpop.f32.mrb[0].mxu0
        %v615 = vadd.f32 0.0, %v614
        %616 = vdwg.mxu0
        %v617 = vtanh.pop %v539
        %v618 = vtanh.pop %v541
        %v619 = vtanh.pop %v543
        %v620 = vtanh.pop %v545
        %v621 = vtanh.pop %v549
        %v622 = vtanh.pop %v551
        %v623 = vtanh.pop %v553
        %v624 = vtanh.pop %v555
        %v625 = vtanh.pop %v559
        %v626 = vtanh.pop %v561
        %v627 = vtanh.pop %v563
        %v628 = vtanh.pop %v565
        %v629 = vtanh.pop %v569
        %v630 = vtanh.pop %v571
        %v631 = vtanh.pop %v573
        %v632 = vtanh.pop %v575
        %v633 = vtanh.pop %v579
        %v634 = vtanh.pop %v581
        %v635 = vtanh.pop %v583
        %v636 = vtanh.pop %v585
        %v637 = vtanh.pop %v589
        %v638 = vtanh.pop %v591
        %v639 = vtanh.pop %v593
        %v640 = vtanh.pop %v595
        %v641 = vtanh.pop %v599
        %v642 = vtanh.pop %v601
        %v643 = vtanh.pop %v603
        %v644 = vtanh.pop %v605
        %v645 = vtanh.pop %v609
        %v646 = vtanh.pop %v611
        %v647 = vtanh.pop %v613
        %v648 = vtanh.pop %v615
        %v649 = vmul.f32 %v617, 0.5
        %v650 = vmul.f32 %v618, 0.5
        %v651 = vmul.f32 %v619, 0.5
        %v652 = vmul.f32 %v620, 0.5
        %v653 = vmul.f32 %v621, 0.5
        %v654 = vmul.f32 %v622, 0.5
        %v655 = vmul.f32 %v623, 0.5
        %v656 = vmul.f32 %v624, 0.5
        %v657 = vadd.f32 %v649, 0.5
        %v658 = vadd.f32 %v650, 0.5
        %v659 = vadd.f32 %v651, 0.5
        %v660 = vadd.f32 %v652, 0.5
        %v661 = vadd.f32 %v653, 0.5
        %v662 = vadd.f32 %v654, 0.5
        %v663 = vadd.f32 %v655, 0.5
        %v664 = vadd.f32 %v656, 0.5
        %v665 = vmul.f32 %v625, 0.5
        %v666 = vmul.f32 %v626, 0.5
        %v667 = vmul.f32 %v627, 0.5
        %v668 = vmul.f32 %v628, 0.5
        %v669 = vmul.f32 %v629, 0.5
        %v670 = vmul.f32 %v630, 0.5
        %v671 = vmul.f32 %v631, 0.5
        %v672 = vmul.f32 %v632, 0.5
        %v673 = vadd.f32 %v665, 0.5
        %v674 = vadd.f32 %v666, 0.5
        %v675 = vadd.f32 %v667, 0.5
        %v676 = vadd.f32 %v668, 0.5
        %v677 = vadd.f32 %v669, 0.5
        %v678 = vadd.f32 %v670, 0.5
        %v679 = vadd.f32 %v671, 0.5
        %v680 = vadd.f32 %v672, 0.5
        %v681 = vmul.f32 %v641, 0.5
        %v682 = vmul.f32 %v642, 0.5
        %v683 = vmul.f32 %v643, 0.5
        %v684 = vmul.f32 %v644, 0.5
        %v685 = vmul.f32 %v645, 0.5
        %v686 = vmul.f32 %v646, 0.5
        %v687 = vmul.f32 %v647, 0.5
        %v688 = vmul.f32 %v648, 0.5
        %v689 = vadd.f32 %v681, 0.5
        %v690 = vadd.f32 %v682, 0.5
        %v691 = vadd.f32 %v683, 0.5
        %v692 = vadd.f32 %v684, 0.5
        %v693 = vadd.f32 %v685, 0.5
        %v694 = vadd.f32 %v686, 0.5
        %v695 = vadd.f32 %v687, 0.5
        %v696 = vadd.f32 %v688, 0.5
        %v697 = vld [vmem:[%s300] sm:$0xff]
        %v698 = vld [vmem:[%s300 + $0x8] sm:$0xff]
        %v699 = vld [vmem:[%s300 + $0x10] sm:$0xff]
        %v700 = vld [vmem:[%s300 + $0x18] sm:$0xff]
        %v701 = vld [vmem:[%s300 + $0x20] sm:$0xff]
        %v702 = vld [vmem:[%s300 + $0x28] sm:$0xff]
        %v703 = vld [vmem:[%s300 + $0x30] sm:$0xff]
        %v704 = vld [vmem:[%s300 + $0x38] sm:$0xff]
        %v705 = vmul.f32 %v697, %v657
        %v706 = vmul.f32 %v698, %v658
        %v707 = vmul.f32 %v699, %v659
        %v708 = vmul.f32 %v700, %v660
        %v709 = vmul.f32 %v701, %v661
        %v710 = vmul.f32 %v702, %v662
        %v711 = vmul.f32 %v703, %v663
        %v712 = vmul.f32 %v704, %v664
        %v713 = vmul.f32 %v673, %v633
        %v714 = vmul.f32 %v674, %v634
        %v715 = vmul.f32 %v675, %v635
        %v716 = vmul.f32 %v676, %v636
        %v717 = vmul.f32 %v677, %v637
        %v718 = vmul.f32 %v678, %v638
        %v719 = vmul.f32 %v679, %v639
        %v720 = vmul.f32 %v680, %v640
        %v721 = vadd.f32 %v705, %v713
        %v722 = vadd.f32 %v706, %v714
        %v723 = vadd.f32 %v707, %v715
        %v724 = vadd.f32 %v708, %v716
        %v725 = vadd.f32 %v709, %v717
        %v726 = vadd.f32 %v710, %v718
        %v727 = vadd.f32 %v711, %v719
        %v728 = vadd.f32 %v712, %v720
        %729 = vst [vmem:[%s333] sm:$0xff] %v721
        %730 = vst [vmem:[%s333 + $0x8] sm:$0xff] %v722
        %731 = vst [vmem:[%s333 + $0x10] sm:$0xff] %v723
        %732 = vst [vmem:[%s333 + $0x18] sm:$0xff] %v724
        %733 = vst [vmem:[%s333 + $0x20] sm:$0xff] %v725
        %734 = vst [vmem:[%s333 + $0x28] sm:$0xff] %v726
        %735 = vst [vmem:[%s333 + $0x30] sm:$0xff] %v727
        %736 = vst [vmem:[%s333 + $0x38] sm:$0xff] %v728
        %v737 = vtanh.pop %v721
        %v738 = vtanh.pop %v722
        %v739 = vtanh.pop %v723
        %v740 = vtanh.pop %v724
        %v741 = vtanh.pop %v725
        %v742 = vtanh.pop %v726
        %v743 = vtanh.pop %v727
        %v744 = vtanh.pop %v728
        %v745 = vmul.f32 %v737, %v689
        %v746 = vmul.f32 %v738, %v690
        %v747 = vmul.f32 %v739, %v691
        %v748 = vmul.f32 %v740, %v692
        %v749 = vmul.f32 %v741, %v693
        %v750 = vmul.f32 %v742, %v694
        %v751 = vmul.f32 %v743, %v695
        %v752 = vmul.f32 %v744, %v696
        %753 = vst [vmem:[%s326] sm:$0xff] %v745
        %754 = vst [vmem:[%s326 + $0x8] sm:$0xff] %v746
        %755 = vst [vmem:[%s326 + $0x10] sm:$0xff] %v747
        %756 = vst [vmem:[%s326 + $0x18] sm:$0xff] %v748
        %757 = vst [vmem:[%s326 + $0x20] sm:$0xff] %v749
        %758 = vst [vmem:[%s326 + $0x28] sm:$0xff] %v750
        %759 = vst [vmem:[%s326 + $0x30] sm:$0xff] %v751
        %760 = vst [vmem:[%s326 + $0x38] sm:$0xff] %v752
        %s761 = sand.u32 %s106, 1
        %s762 = scalar_lea.sflag [#allocation5], %s761
        %s763 = sand.u32 %s106, 1
        %s764 = smul.addr %s763, 64
        %s765 = scalar_lea.vmem [#allocation6], %s764
        %s766 = sand.u32 %s132, 1
        %s767 = scalar_lea.sflag [#allocation8], %s766
        %s768 = sand.u32 %s132, 1
        %s769 = smul.addr %s768, 64
        %s770 = scalar_lea.vmem [#allocation7], %s769
        // Predicated region
        $region75: #{convlstm_forward_cm.1} parent=65 // pred_check
          %p771 = pneg %p116
        $region76: #{convlstm_forward_cm.1} parent=65 // pred_check_branch
          %773 = sbr.rel (%p771) target = $region78
        $region77: #{convlstm_forward_cm.1} parent=65 // pred_region
          %s774 = smul.u32 2, %s25
          %s776 = ssub.s32 1024, 1024
          %777 = vsyncadd %s762, %s776
          %s778 = smul.addr %s774, 128
          %s779 = scalar_lea.hbm %s3, %s778
          %s780 = sshll.u32 %s765, 4
          %s781 = int_to_ptr.vmem [resolvable:$true] %s780
          %786 = dma.vmem_to_hbm [thread:$0]  %s781, 1024, %s779, %s762, 256, 512, 16
        $region78: #{convlstm_forward_cm.1} parent=65 // pred_fallthru
          _
        // Predicated region
        $region79: #{convlstm_forward_cm.1} parent=65 // pred_check
          %p787 = pneg %p142
        $region80: #{convlstm_forward_cm.1} parent=65 // pred_check_branch
          %789 = sbr.rel (%p787) target = $region82
        $region81: #{convlstm_forward_cm.1} parent=65 // pred_region
          %s790 = smul.u32 2, %s25
          %s792 = ssub.s32 1024, 1024
          %793 = vsyncadd %s767, %s792
          %s794 = smul.addr %s790, 128
          %s795 = scalar_lea.hbm %s4, %s794
          %s796 = sshll.u32 %s770, 4
          %s797 = int_to_ptr.vmem [resolvable:$true] %s796
          %802 = dma.vmem_to_hbm [thread:$0]  %s797, 1024, %s795, %s767, 256, 512, 16
        $region82: #{convlstm_forward_cm.1} parent=65 // pred_fallthru
          _
      $region66: #{convlstm_forward_cm.1} parent=5 // pred_fallthru
        _
      %p803 = scmp.le.s32.totalorder 2, %s20
      // Predicated region
      $region83: #{convlstm_forward_cm.1} parent=5 // pred_check
        %p804 = pneg %p803
      $region84: #{convlstm_forward_cm.1} parent=5 // pred_check_branch
        %806 = sbr.rel (%p804) target = $region86
      $region85: #{convlstm_forward_cm.1} parent=5 // pred_region
        %s807 = ssub.s32 %s20, 2
        // Predicated region
        $region87: #{convlstm_forward_cm.1} parent=85 // pred_check
          %p808 = pneg %p122
        $region88: #{convlstm_forward_cm.1} parent=85 // pred_check_branch
          %810 = sbr.rel (%p808) target = $region90
        $region89: #{convlstm_forward_cm.1} parent=85 // pred_region
          %s811 = sand.u32 %s107, 1
          %s812 = scalar_lea.sflag [#allocation5], %s811
          %s813 = sand.u32 %s107, 1
          %s814 = smul.addr %s813, 64
          %s815 = scalar_lea.vmem [#allocation6], %s814
          %816 = dma.done %s812, 1024
        $region90: #{convlstm_forward_cm.1} parent=85 // pred_fallthru
          _
        // Predicated region
        $region91: #{convlstm_forward_cm.1} parent=85 // pred_check
          %p817 = pneg %p148
        $region92: #{convlstm_forward_cm.1} parent=85 // pred_check_branch
          %819 = sbr.rel (%p817) target = $region94
        $region93: #{convlstm_forward_cm.1} parent=85 // pred_region
          %s820 = sand.u32 %s133, 1
          %s821 = scalar_lea.sflag [#allocation8], %s820
          %s822 = sand.u32 %s133, 1
          %s823 = smul.addr %s822, 64
          %s824 = scalar_lea.vmem [#allocation7], %s823
          %825 = dma.done %s821, 1024
        $region94: #{convlstm_forward_cm.1} parent=85 // pred_fallthru
          _
      $region86: #{convlstm_forward_cm.1} parent=5 // pred_fallthru
        _
    $region6: #{convlstm_forward_cm.1} parent=1 // loop_footer
      %s24 = sadd.s32 1, %s20
    $region7: #{convlstm_forward_cm.1} parent=1 // loop_footer_branch
      %19 = sbr.rel target = $region3
    $region8: #{convlstm_forward_cm.1} parent=1 // loop_exit
      _
    %826 = vsyncpa [#allocation4], 1
    %s827 = scalar_lea.sflag [#allocation4], 1
    %828 = vsyncpa %s827, 1
    %829 = vsyncpa [#allocation5], 1
    %s830 = scalar_lea.sflag [#allocation5], 1
    %831 = vsyncpa %s830, 1
    %832 = vsyncpa [#allocation8], 1
    %s833 = scalar_lea.sflag [#allocation8], 1
    %834 = vsyncpa %s833, 1

</llo_original>
